<compile_context>
chip_gen: v7x
topology: tpu7x:2x2x1
jax: 0.10.0
libtpu: 0.0.40
codegen_flags: <defaults>
</compile_context>

<pallas_src>
import functools

import jax
import jax.numpy as jnp
from jax.experimental import pallas as pl
from jax.experimental.pallas import tpu as pltpu


def _round_up(x, m):
    return (x + m - 1) // m * m


def _choose_tm(M, tm_max):
    # Pixels live on the lane axis -> tm must be a multiple of 128.  Cap it so the
    # grid keeps >= 2 steps whenever M allows (keeps both v7x TensorCores busy),
    # while growing toward tm_max for long pixel streams (HBM-roofline-sized tiles).
    tm = _round_up(-(-M // 2), 128)
    return max(128, min(tm, tm_max))


def _mlp_kernel(*refs, num_layers):
    # refs = (x_ref, w0_ref, b0_ref, w1_ref, b1_ref, ..., o_ref); channel-major.
    x_ref = refs[0]
    o_ref = refs[-1]
    wb = refs[1:-1]
    h = x_ref[...]                                     # (C_in, tm) bf16
    for li in range(num_layers):
        w = wb[2 * li][...]                            # (C_out, C_in) bf16
        b = wb[2 * li + 1][...]                        # (C_out, 1)  f32
        h = jnp.dot(w, h, preferred_element_type=jnp.float32) + b
        if li < num_layers - 1:                        # ReLU on all but the final conv
            h = jnp.maximum(h, 0.0).astype(jnp.bfloat16)
    # final conv has 1 real output channel (rows 1..7 are zero padding) -> lane-dense store
    o_ref[...] = h[:1, :]                              # (1, tm) f32


def link_function_for_event(edge_features, node_features, weights, biases, *, tm_max=2048):
    """weights[i]: (C_in_i, C_out_i) f32, biases[i]: (C_out_i,) f32 (1x1 Conv2d params)."""
    B, E, N, _ = edge_features.shape
    F = node_features.shape[1]
    M = B * N * N
    C0 = E + 2 * F

    # --- glue (plain JAX): build the concatenated conv input directly channel-major ---
    # x_cm[c, b*N*N + i*N + j] = cat([edge[b,:,i,j], node[b,:,i], node[b,:,j]])[c]
    edge_cm = jnp.transpose(edge_features, (1, 0, 2, 3)).reshape(E, M)
    node_cm = jnp.transpose(node_features, (1, 0, 2))                        # (F, B, N)
    row_cm = jnp.broadcast_to(node_cm[:, :, :, None], (F, B, N, N)).reshape(F, M)
    col_cm = jnp.broadcast_to(node_cm[:, :, None, :], (F, B, N, N)).reshape(F, M)
    x_cm = jnp.concatenate([edge_cm, row_cm, col_cm], axis=0)                # (C0, M)

    tm = _choose_tm(M, tm_max)
    MP = _round_up(M, tm)
    C0p = _round_up(C0, 8)       # sublane-only pad; zero rows are mathematically inert

    x_p = jnp.zeros((C0p, MP), jnp.bfloat16).at[:C0, :M].set(x_cm.astype(jnp.bfloat16))

    # Transposed (C_out, C_in) bf16 weights, f32 (C_out, 1) biases; channel dims
    # padded only to multiples of 8 sublanes (zero pad rows/cols are inert).
    num_layers = len(weights)
    wt_list, b_list = [], []
    cin_p = C0p
    for w, b in zip(weights, biases):
        cin, cout = w.shape
        cout_p = _round_up(cout, 8)
        wt = jnp.zeros((cout_p, cin_p), jnp.bfloat16).at[:cout, :cin].set(
            w.T.astype(jnp.bfloat16))
        bp = jnp.zeros((cout_p, 1), jnp.float32).at[:cout, 0].set(b.astype(jnp.float32))
        wt_list.append(wt)
        b_list.append(bp)
        cin_p = cout_p

    kernel = functools.partial(_mlp_kernel, num_layers=num_layers)

    in_specs = [pl.BlockSpec((C0p, tm), lambda i: (0, i))]
    operands = [x_p]
    for li in range(num_layers):
        cout_p, cin_pl = wt_list[li].shape
        in_specs.append(pl.BlockSpec((cout_p, cin_pl), lambda i: (0, 0)))   # whole tiny weight
        in_specs.append(pl.BlockSpec((cout_p, 1), lambda i: (0, 0)))
        operands.append(wt_list[li])
        operands.append(b_list[li])

    out = pl.pallas_call(
        kernel,
        out_shape=jax.ShapeDtypeStruct((1, MP), jnp.float32),
        grid_spec=pltpu.PrefetchScalarGridSpec(
            num_scalar_prefetch=0,
            grid=(MP // tm,),
            in_specs=in_specs,
            out_specs=pl.BlockSpec((1, tm), lambda i: (0, i)),
        ),
        compiler_params=pltpu.CompilerParams(dimension_semantics=("parallel",)),
    )(*operands)

    # lane-dense single-channel result -> just slice the pixel padding and reshape
    return out[0, :M].reshape(B, N, N)


if __name__ == "__main__":
    args = dict(edge_feature_size=6, node_feature_size=5,
                link_hidden_size=32, link_hidden_layers=3)
    B, N = 2, 8

    key = jax.random.PRNGKey(0)
    k_e, k_n = jax.random.split(key)
    edge = jax.random.normal(k_e, (B, args['edge_feature_size'], N, N), jnp.float32)
    node = jax.random.normal(k_n, (B, args['node_feature_size'], N), jnp.float32)

    # Deterministic parameter init (Conv2d(in, out, 1) <-> dense (in, out) matrix).
    in_size = args['edge_feature_size'] + 2 * args['node_feature_size']
    hidden = args['link_hidden_size']
    layer_dims, c = [], in_size
    for _ in range(args['link_hidden_layers'] - 1):
        layer_dims.append((c, hidden))
        c = hidden
    layer_dims.append((c, 1))

    weights, biases = [], []
    for li, (cin, cout) in enumerate(layer_dims):
        bound = 1.0 / (cin ** 0.5)
        kw = jax.random.fold_in(key, 100 + li)
        kb = jax.random.fold_in(key, 200 + li)
        weights.append(jax.random.uniform(kw, (cin, cout), jnp.float32, -bound, bound))
        biases.append(jax.random.uniform(kb, (cout,), jnp.float32, -bound, bound))

    out = link_function_for_event(edge, node, weights, biases)
    jax.block_until_ready(out)
    assert out.shape == (B, N, N)

    # pure-JAX f32 reference (same math, NCHW) to validate the kernel
    rowr = jnp.broadcast_to(node[:, :, :, None], (B, args['node_feature_size'], N, N))
    colr = jnp.broadcast_to(node[:, :, None, :], (B, args['node_feature_size'], N, N))
    h = jnp.concatenate([edge, rowr, colr], axis=1)
    for li, (w, b) in enumerate(zip(weights, biases)):
        h = jnp.einsum('bcij,cd->bdij', h, w) + b[None, :, None, None]
        if li < len(weights) - 1:
            h = jnp.maximum(h, 0.0)
    ref = h[:, 0, :, :]
    # bf16 matmul inputs with f32 accumulation -> loosened tolerance vs f32 reference
    assert jnp.allclose(out, ref, atol=5e-2, rtol=5e-2), "mismatch vs reference"

    print("KERNEL_OK")
</pallas_src>

<mosaic_0001>
module attributes {stable_mosaic.version = 11 : i64} {
  func.func @_mlp_kernel(%arg0: i32, %arg1: memref<16x128xbf16, #tpu.memory_space<vmem>>, %arg2: memref<32x16xbf16, #tpu.memory_space<vmem>>, %arg3: memref<32x1xf32, #tpu.memory_space<vmem>>, %arg4: memref<32x32xbf16, #tpu.memory_space<vmem>>, %arg5: memref<32x1xf32, #tpu.memory_space<vmem>>, %arg6: memref<8x32xbf16, #tpu.memory_space<vmem>>, %arg7: memref<8x1xf32, #tpu.memory_space<vmem>>, %arg8: memref<1x128xf32, #tpu.memory_space<vmem>>) attributes {dimension_semantics = [#tpu.dimension_semantics<parallel>], iteration_bounds = array<i64: 1>, scalar_prefetch = 0 : i64, scratch_operands = 0 : i64, tpu.core_type = #tpu.core_type<tc>, window_params = [{transform_indices = @transform_0, window_bounds = array<i64: 16, 128>}, {pipeline_mode = #tpu.pipeline_mode<synchronous>, transform_indices = @transform_1, window_bounds = array<i64: 32, 16>}, {pipeline_mode = #tpu.pipeline_mode<synchronous>, transform_indices = @transform_2, window_bounds = array<i64: 32, 1>}, {pipeline_mode = #tpu.pipeline_mode<synchronous>, transform_indices = @transform_3, window_bounds = array<i64: 32, 32>}, {pipeline_mode = #tpu.pipeline_mode<synchronous>, transform_indices = @transform_4, window_bounds = array<i64: 32, 1>}, {pipeline_mode = #tpu.pipeline_mode<synchronous>, transform_indices = @transform_5, window_bounds = array<i64: 8, 32>}, {pipeline_mode = #tpu.pipeline_mode<synchronous>, transform_indices = @transform_6, window_bounds = array<i64: 8, 1>}, {transform_indices = @transform_7, window_bounds = array<i64: 1, 128>}]} {
    %c0 = arith.constant 0 : index
    %c0_0 = arith.constant 0 : index
    %0 = vector.load %arg1[%c0, %c0_0] : memref<16x128xbf16, #tpu.memory_space<vmem>>, vector<16x128xbf16>
    %c0_1 = arith.constant 0 : index
    %c0_2 = arith.constant 0 : index
    %1 = vector.load %arg2[%c0_1, %c0_2] : memref<32x16xbf16, #tpu.memory_space<vmem>>, vector<32x16xbf16>
    %c0_3 = arith.constant 0 : index
    %c0_4 = arith.constant 0 : index
    %2 = vector.load %arg3[%c0_3, %c0_4] : memref<32x1xf32, #tpu.memory_space<vmem>>, vector<32x1xf32>
    %cst = arith.constant dense<0.000000e+00> : vector<32x128xf32>
    %3 = tpu.matmul %1, %0, %cst {dimension_numbers = #tpu.dot_dimension_numbers<[1], [0], [0], [1], [0, 0, 1, 1], [], []>} : vector<32x16xbf16>, vector<16x128xbf16>, vector<32x128xf32> -> vector<32x128xf32>
    %4 = vector.broadcast %2 : vector<32x1xf32> to vector<32x128xf32>
    %5 = arith.addf %3, %4 : vector<32x128xf32>
    %cst_5 = arith.constant 0.000000e+00 : f32
    %6 = vector.broadcast %cst_5 : f32 to vector<32x128xf32>
    %7 = arith.maximumf %5, %6 : vector<32x128xf32>
    %8 = arith.truncf %7 : vector<32x128xf32> to vector<32x128xbf16>
    %c0_6 = arith.constant 0 : index
    %c0_7 = arith.constant 0 : index
    %9 = vector.load %arg4[%c0_6, %c0_7] : memref<32x32xbf16, #tpu.memory_space<vmem>>, vector<32x32xbf16>
    %c0_8 = arith.constant 0 : index
    %c0_9 = arith.constant 0 : index
    %10 = vector.load %arg5[%c0_8, %c0_9] : memref<32x1xf32, #tpu.memory_space<vmem>>, vector<32x1xf32>
    %cst_10 = arith.constant dense<0.000000e+00> : vector<32x128xf32>
    %11 = tpu.matmul %9, %8, %cst_10 {dimension_numbers = #tpu.dot_dimension_numbers<[1], [0], [0], [1], [0, 0, 1, 1], [], []>} : vector<32x32xbf16>, vector<32x128xbf16>, vector<32x128xf32> -> vector<32x128xf32>
    %12 = vector.broadcast %10 : vector<32x1xf32> to vector<32x128xf32>
    %13 = arith.addf %11, %12 : vector<32x128xf32>
    %cst_11 = arith.constant 0.000000e+00 : f32
    %14 = vector.broadcast %cst_11 : f32 to vector<32x128xf32>
    %15 = arith.maximumf %13, %14 : vector<32x128xf32>
    %16 = arith.truncf %15 : vector<32x128xf32> to vector<32x128xbf16>
    %c0_12 = arith.constant 0 : index
    %c0_13 = arith.constant 0 : index
    %17 = vector.load %arg6[%c0_12, %c0_13] : memref<8x32xbf16, #tpu.memory_space<vmem>>, vector<8x32xbf16>
    %c0_14 = arith.constant 0 : index
    %c0_15 = arith.constant 0 : index
    %18 = vector.load %arg7[%c0_14, %c0_15] : memref<8x1xf32, #tpu.memory_space<vmem>>, vector<8x1xf32>
    %cst_16 = arith.constant dense<0.000000e+00> : vector<8x128xf32>
    %19 = tpu.matmul %17, %16, %cst_16 {dimension_numbers = #tpu.dot_dimension_numbers<[1], [0], [0], [1], [0, 0, 1, 1], [], []>} : vector<8x32xbf16>, vector<32x128xbf16>, vector<8x128xf32> -> vector<8x128xf32>
    %20 = vector.broadcast %18 : vector<8x1xf32> to vector<8x128xf32>
    %21 = arith.addf %19, %20 : vector<8x128xf32>
    %22 = vector.extract_strided_slice %21 {offsets = [0, 0], sizes = [1, 128], strides = [1, 1]} : vector<8x128xf32> to vector<1x128xf32>
    %c0_17 = arith.constant 0 : index
    %c0_18 = arith.constant 0 : index
    %23 = vector.load %arg8[%c0_17, %c0_18] : memref<1x128xf32, #tpu.memory_space<vmem>>, vector<1x128xf32>
    tpu.vector_store %arg8[%c0_17, %c0_18], %22 {strides = array<i32>} : memref<1x128xf32, #tpu.memory_space<vmem>>, vector<1x128xf32>,
    return
  }
  func.func @transform_0(%arg0: i32) -> (i32, i32) {
    %c0_i32 = arith.constant 0 : i32
    %c0_i32_0 = arith.constant 0 : i32
    return %c0_i32, %arg0 : i32, i32
  }
  func.func @transform_1(%arg0: i32) -> (i32, i32) {
    %c0_i32 = arith.constant 0 : i32
    %c0_i32_0 = arith.constant 0 : i32
    %c0_i32_1 = arith.constant 0 : i32
    return %c0_i32, %c0_i32_0 : i32, i32
  }
  func.func @transform_2(%arg0: i32) -> (i32, i32) {
    %c0_i32 = arith.constant 0 : i32
    %c0_i32_0 = arith.constant 0 : i32
    %c0_i32_1 = arith.constant 0 : i32
    return %c0_i32, %c0_i32_0 : i32, i32
  }
  func.func @transform_3(%arg0: i32) -> (i32, i32) {
    %c0_i32 = arith.constant 0 : i32
    %c0_i32_0 = arith.constant 0 : i32
    %c0_i32_1 = arith.constant 0 : i32
    return %c0_i32, %c0_i32_0 : i32, i32
  }
  func.func @transform_4(%arg0: i32) -> (i32, i32) {
    %c0_i32 = arith.constant 0 : i32
    %c0_i32_0 = arith.constant 0 : i32
    %c0_i32_1 = arith.constant 0 : i32
    return %c0_i32, %c0_i32_0 : i32, i32
  }
  func.func @transform_5(%arg0: i32) -> (i32, i32) {
    %c0_i32 = arith.constant 0 : i32
    %c0_i32_0 = arith.constant 0 : i32
    %c0_i32_1 = arith.constant 0 : i32
    return %c0_i32, %c0_i32_0 : i32, i32
  }
  func.func @transform_6(%arg0: i32) -> (i32, i32) {
    %c0_i32 = arith.constant 0 : i32
    %c0_i32_0 = arith.constant 0 : i32
    %c0_i32_1 = arith.constant 0 : i32
    return %c0_i32, %c0_i32_0 : i32, i32
  }
  func.func @transform_7(%arg0: i32) -> (i32, i32) {
    %c0_i32 = arith.constant 0 : i32
    %c0_i32_0 = arith.constant 0 : i32
    return %c0_i32, %arg0 : i32, i32
  }
}

</mosaic_0001>

<llo_original>
// kernel: tpu_custom_call.1
$region0: #{tpu_custom_call.1}
  #allocation0 [shape = 'u32[]', space=smem, size = 0x4, offset = 0x4, fixed_abs, tag = 'smem constant byte address 0x4 - core index']
  #allocation1 [shape = 'u32[144,128]{1,0:T(1,128)}', space=vmem, size = 0x12000, scoped, tag = 'internal scratch']
  %s0 = inlined_call_operand.vmem [shape: bf16[16,128], index: 0, kind: input, shape index: {}]
  %s1 = inlined_call_operand.vmem [shape: bf16[32,16], index: 1, kind: input, shape index: {}]
  %s2 = inlined_call_operand.vmem [shape: f32[32,1], index: 2, kind: input, shape index: {}]
  %s3 = inlined_call_operand.vmem [shape: bf16[32,32], index: 3, kind: input, shape index: {}]
  %s4 = inlined_call_operand.vmem [shape: f32[32,1], index: 4, kind: input, shape index: {}]
  %s5 = inlined_call_operand.vmem [shape: bf16[8,32], index: 5, kind: input, shape index: {}]
  %s6 = inlined_call_operand.vmem [shape: f32[8,1], index: 6, kind: input, shape index: {}]
  %s7 = inlined_call_operand.hbm [shape: f32[1,128], index: 7, kind: output, shape index: {}]
  %s8 = sld [smem:[#allocation0]]
  $region38: #{tpu_custom_call.1} parent=0
    _
  %s10 = ssub.s32 1, %s8
  %s11 = scalar_select 0, %s10, %s8
  $region1: #{tpu_custom_call.1} parent=0
    #allocation2 [shape = 'u8[512]{0}', space=vmem, size = 0x400, scoped, tag = 'output window, operand 0, single buffered']
    #allocation3 [shape = 's32[1]{0}', space=sflag, size = 0x4, scoped, tag = 'scoped memory for tpu_custom_call.1']
    %12 = vsyncpa [#allocation3], 0
    // Predicated region
    $region2: #{tpu_custom_call.1} parent=1 // pred_check
      _
    $region3: #{tpu_custom_call.1} parent=1 // pred_check_branch
      %14 = sbr.rel (0) target = $region5
    $region4: #{tpu_custom_call.1} parent=1 // pred_region
      _
    $region5: #{tpu_custom_call.1} parent=1 // pred_fallthru
      _
    // Predicated region
    $region6: #{tpu_custom_call.1} parent=1 // pred_check
      _
    $region7: #{tpu_custom_call.1} parent=1 // pred_check_branch
      %16 = sbr.rel (0) target = $region9
    $region8: #{tpu_custom_call.1} parent=1 // pred_region
      _
    $region9: #{tpu_custom_call.1} parent=1 // pred_fallthru
      _
    // Predicated region
    $region10: #{tpu_custom_call.1} parent=1 // pred_check
      _
    $region11: #{tpu_custom_call.1} parent=1 // pred_check_branch
      %18 = sbr.rel (0) target = $region13
    $region12: #{tpu_custom_call.1} parent=1 // pred_region
      _
    $region13: #{tpu_custom_call.1} parent=1 // pred_fallthru
      _
    // Predicated region
    $region14: #{tpu_custom_call.1} parent=1 // pred_check
      _
    $region15: #{tpu_custom_call.1} parent=1 // pred_check_branch
      %20 = sbr.rel (0) target = $region17
    $region16: #{tpu_custom_call.1} parent=1 // pred_region
      _
    $region17: #{tpu_custom_call.1} parent=1 // pred_fallthru
      _
    // Predicated region
    $region18: #{tpu_custom_call.1} parent=1 // pred_check
      _
    $region19: #{tpu_custom_call.1} parent=1 // pred_check_branch
      %22 = sbr.rel (0) target = $region21
    $region20: #{tpu_custom_call.1} parent=1 // pred_region
      _
    $region21: #{tpu_custom_call.1} parent=1 // pred_fallthru
      _
    // Predicated region
    $region22: #{tpu_custom_call.1} parent=1 // pred_check
      _
    $region23: #{tpu_custom_call.1} parent=1 // pred_check_branch
      %24 = sbr.rel (0) target = $region25
    $region24: #{tpu_custom_call.1} parent=1 // pred_region
      _
    $region25: #{tpu_custom_call.1} parent=1 // pred_fallthru
      _
    // Predicated region
    $region26: #{tpu_custom_call.1} parent=1 // pred_check
      _
    $region27: #{tpu_custom_call.1} parent=1 // pred_check_branch
      %26 = sbr.rel (0) target = $region29
    $region28: #{tpu_custom_call.1} parent=1 // pred_region
      _
    $region29: #{tpu_custom_call.1} parent=1 // pred_fallthru
      _
    %v28 = vld [vmem:[%s0] sm:$0xf]
    %v29 = vld [vmem:[%s0 + $0x4] sm:$0xf]
    %v30 = vld [vmem:[%s1] sm:$0xf]
    %v31 = vld [vmem:[%s1 + $0x4] sm:$0xf]
    %v32 = vld [vmem:[%s1 + $0x8] sm:$0xf]
    %v33 = vld [vmem:[%s1 + $0xc] sm:$0xf]
    %v34 = vld [vmem:[%s2] sm:$0xff]
    %v35 = vld [vmem:[%s2 + $0x8] sm:$0xff]
    %v36 = vld [vmem:[%s2 + $0x10] sm:$0xff]
    %v37 = vld [vmem:[%s2 + $0x18] sm:$0xff]
    %39 = vset.pattern.permute.xlu0 0
    %40 = vperm.xlu0 %39, %v34
    %v41 = vpop.permute.xlu0 %40
    %44 = vset.pattern.permute.xlu0 0
    %45 = vperm.xlu0 %44, %v35
    %v46 = vpop.permute.xlu0 %45
    %49 = vset.pattern.permute.xlu0 0
    %50 = vperm.xlu0 %49, %v36
    %v51 = vpop.permute.xlu0 %50
    %54 = vset.pattern.permute.xlu0 0
    %55 = vperm.xlu0 %54, %v37
    %v56 = vpop.permute.xlu0 %55
    %v62 = vunpack.c.l.b16 %v30
    %v63 = vunpack.c.l.b16 %v31
    %v64 = vunpack.c.l.b16 %v32
    %v65 = vunpack.c.l.b16 %v33
    %v66 = vpack.c.b16 %v63, %v62
    %v67 = vpack.c.b16 %v65, %v64
    %v70 = vunpack.c.l.b16 %v28
    %v71 = vunpack.c.l.b16 %v29
    %v72 = vpack.c.b16 %v71, %v70
    %vm74 = vcmask 130048
    %v76 = vsel %vm74, %v66, 0
    %v79 = vsel %vm74, %v67, 0
    %81 = vmatprep.subr.bf16.mxu0 0
    %82 = vmatpush1.bf16.msra.mxu0 %v72
    %83 = vmatprep.subr.bf16.mxu0 0
    %84 = vmatpush1.bf16.msra.mxu0 0
    %85 = vmatprep.subr.bf16.mxu0 0
    %86 = vmatpush1.bf16.msra.mxu0 0
    %87 = vmatprep.subr.bf16.mxu0 0
    %88 = vmatpush1.bf16.msra.mxu0 0
    %89 = vmatprep.subr.bf16.mxu0 0
    %90 = vmatpush1.bf16.msra.mxu0 0
    %91 = vmatprep.subr.bf16.mxu0 0
    %92 = vmatpush1.bf16.msra.mxu0 0
    %93 = vmatprep.subr.bf16.mxu0 0
    %94 = vmatpush1.bf16.msra.mxu0 0
    %95 = vmatprep.subr.bf16.mxu0 0
    %96 = vmatpush1.bf16.msra.mxu0 0
    %97 = vmatprep.subr.bf16.mxu0 0
    %98 = vmatpush1.bf16.msra.mxu0 0
    %99 = vmatprep.subr.bf16.mxu0 0
    %100 = vmatpush1.bf16.msra.mxu0 0
    %101 = vmatprep.subr.bf16.mxu0 0
    %102 = vmatpush1.bf16.msra.mxu0 0
    %103 = vmatprep.subr.bf16.mxu0 0
    %104 = vmatpush1.bf16.msra.mxu0 0
    %105 = vmatprep.subr.bf16.mxu0 0
    %106 = vmatpush1.bf16.msra.mxu0 0
    %107 = vmatprep.subr.bf16.mxu0 0
    %108 = vmatpush1.bf16.msra.mxu0 0
    %109 = vmatprep.subr.bf16.mxu0 0
    %110 = vmatpush1.bf16.msra.mxu0 0
    %111 = vmatprep.subr.bf16.mxu0 0
    %112 = vmatpush1.bf16.msra.mxu0 0
    %113 = vmatprep.mubr.bf16.mxu0 0
    %114 = vmatmul.mubr.bf16.gmra.mrb[0].mxu0 %v76
    %v115 = vpop.f32.mrb[0].mxu0
    %v116 = vadd.f32 %v41, %v115
    %v117 = vpop.f32.mrb[0].mxu0
    %v118 = vpop.f32.mrb[0].mxu0
    %v119 = vadd.f32 %v46, %v118
    %v120 = vpop.f32.mrb[0].mxu0
    %121 = vmatprep.mubr.bf16.mxu0 0
    %122 = vmatmul.mubr.bf16.gmra.mrb[0].mxu0 %v79
    %v123 = vpop.f32.mrb[0].mxu0
    %v124 = vadd.f32 %v51, %v123
    %v125 = vpop.f32.mrb[0].mxu0
    %v126 = vpop.f32.mrb[0].mxu0
    %v127 = vadd.f32 %v56, %v126
    %v128 = vpop.f32.mrb[0].mxu0
    %129 = vdwg.mxu0
    %v130 = vmax.f32 %v116, 0.0
    %v131 = vmax.f32 %v119, 0.0
    %v132 = vmax.f32 %v124, 0.0
    %v133 = vmax.f32 %v127, 0.0
    %v134 = vpack.c.bf16 %v131, %v130
    %v135 = vpack.c.bf16 %v133, %v132
    %v136 = vld [vmem:[%s3] sm:$0xf]
    %v137 = vld [vmem:[%s3 + $0x4] sm:$0xf]
    %v138 = vld [vmem:[%s3 + $0x8] sm:$0xf]
    %v139 = vld [vmem:[%s3 + $0xc] sm:$0xf]
    %v140 = vld [vmem:[%s4] sm:$0xff]
    %v141 = vld [vmem:[%s4 + $0x8] sm:$0xff]
    %v142 = vld [vmem:[%s4 + $0x10] sm:$0xff]
    %v143 = vld [vmem:[%s4 + $0x18] sm:$0xff]
    %145 = vset.pattern.permute.xlu0 0
    %146 = vperm.xlu0 %145, %v140
    %v147 = vpop.permute.xlu0 %146
    %150 = vset.pattern.permute.xlu0 0
    %151 = vperm.xlu0 %150, %v141
    %v152 = vpop.permute.xlu0 %151
    %155 = vset.pattern.permute.xlu0 0
    %156 = vperm.xlu0 %155, %v142
    %v157 = vpop.permute.xlu0 %156
    %160 = vset.pattern.permute.xlu0 0
    %161 = vperm.xlu0 %160, %v143
    %v162 = vpop.permute.xlu0 %161
    %v168 = vunpack.c.l.b16 %v136
    %v169 = vunpack.c.l.b16 %v137
    %v170 = vunpack.c.l.b16 %v138
    %v171 = vunpack.c.l.b16 %v139
    %v172 = vpack.c.b16 %v169, %v168
    %v173 = vpack.c.b16 %v171, %v170
    %vm174 = vcmask 261120
    %v176 = vsel %vm174, %v172, 0
    %v179 = vsel %vm174, %v173, 0
    %181 = vmatprep.subr.bf16.mxu0 0
    %182 = vmatpush1.bf16.msra.mxu0 %v134
    %183 = vmatprep.subr.bf16.mxu0 0
    %184 = vmatpush1.bf16.msra.mxu0 %v135
    %185 = vmatprep.subr.bf16.mxu0 0
    %186 = vmatpush1.bf16.msra.mxu0 0
    %187 = vmatprep.subr.bf16.mxu0 0
    %188 = vmatpush1.bf16.msra.mxu0 0
    %189 = vmatprep.subr.bf16.mxu0 0
    %190 = vmatpush1.bf16.msra.mxu0 0
    %191 = vmatprep.subr.bf16.mxu0 0
    %192 = vmatpush1.bf16.msra.mxu0 0
    %193 = vmatprep.subr.bf16.mxu0 0
    %194 = vmatpush1.bf16.msra.mxu0 0
    %195 = vmatprep.subr.bf16.mxu0 0
    %196 = vmatpush1.bf16.msra.mxu0 0
    %197 = vmatprep.subr.bf16.mxu0 0
    %198 = vmatpush1.bf16.msra.mxu0 0
    %199 = vmatprep.subr.bf16.mxu0 0
    %200 = vmatpush1.bf16.msra.mxu0 0
    %201 = vmatprep.subr.bf16.mxu0 0
    %202 = vmatpush1.bf16.msra.mxu0 0
    %203 = vmatprep.subr.bf16.mxu0 0
    %204 = vmatpush1.bf16.msra.mxu0 0
    %205 = vmatprep.subr.bf16.mxu0 0
    %206 = vmatpush1.bf16.msra.mxu0 0
    %207 = vmatprep.subr.bf16.mxu0 0
    %208 = vmatpush1.bf16.msra.mxu0 0
    %209 = vmatprep.subr.bf16.mxu0 0
    %210 = vmatpush1.bf16.msra.mxu0 0
    %211 = vmatprep.subr.bf16.mxu0 0
    %212 = vmatpush1.bf16.msra.mxu0 0
    %213 = vmatprep.mubr.bf16.mxu0 0
    %214 = vmatmul.mubr.bf16.gmra.mrb[0].mxu0 %v176
    %v215 = vpop.f32.mrb[0].mxu0
    %v216 = vadd.f32 %v147, %v215
    %v217 = vpop.f32.mrb[0].mxu0
    %v218 = vpop.f32.mrb[0].mxu0
    %v219 = vadd.f32 %v152, %v218
    %v220 = vpop.f32.mrb[0].mxu0
    %221 = vmatprep.mubr.bf16.mxu0 0
    %222 = vmatmul.mubr.bf16.gmra.mrb[0].mxu0 %v179
    %v223 = vpop.f32.mrb[0].mxu0
    %v224 = vadd.f32 %v157, %v223
    %v225 = vpop.f32.mrb[0].mxu0
    %v226 = vpop.f32.mrb[0].mxu0
    %v227 = vadd.f32 %v162, %v226
    %v228 = vpop.f32.mrb[0].mxu0
    %229 = vdwg.mxu0
    %v230 = vmax.f32 %v216, 0.0
    %v231 = vmax.f32 %v219, 0.0
    %v232 = vmax.f32 %v224, 0.0
    %v233 = vmax.f32 %v227, 0.0
    %v234 = vpack.c.bf16 %v231, %v230
    %v235 = vpack.c.bf16 %v233, %v232
    %v236 = vld [vmem:[%s5] sm:$0xf]
    %v237 = vld [vmem:[%s6] sm:$0xff]
    %239 = vset.pattern.permute.xlu0 0
    %240 = vperm.xlu0 %239, %v237
    %v241 = vpop.permute.xlu0 %240
    %v244 = vsel %vm174, %v236, 0
    %246 = vmatprep.subr.bf16.mxu0 0
    %247 = vmatpush1.bf16.msra.mxu0 %v234
    %248 = vmatprep.subr.bf16.mxu0 0
    %249 = vmatpush1.bf16.msra.mxu0 %v235
    %250 = vmatprep.subr.bf16.mxu0 0
    %251 = vmatpush1.bf16.msra.mxu0 0
    %252 = vmatprep.subr.bf16.mxu0 0
    %253 = vmatpush1.bf16.msra.mxu0 0
    %254 = vmatprep.subr.bf16.mxu0 0
    %255 = vmatpush1.bf16.msra.mxu0 0
    %256 = vmatprep.subr.bf16.mxu0 0
    %257 = vmatpush1.bf16.msra.mxu0 0
    %258 = vmatprep.subr.bf16.mxu0 0
    %259 = vmatpush1.bf16.msra.mxu0 0
    %260 = vmatprep.subr.bf16.mxu0 0
    %261 = vmatpush1.bf16.msra.mxu0 0
    %262 = vmatprep.subr.bf16.mxu0 0
    %263 = vmatpush1.bf16.msra.mxu0 0
    %264 = vmatprep.subr.bf16.mxu0 0
    %265 = vmatpush1.bf16.msra.mxu0 0
    %266 = vmatprep.subr.bf16.mxu0 0
    %267 = vmatpush1.bf16.msra.mxu0 0
    %268 = vmatprep.subr.bf16.mxu0 0
    %269 = vmatpush1.bf16.msra.mxu0 0
    %270 = vmatprep.subr.bf16.mxu0 0
    %271 = vmatpush1.bf16.msra.mxu0 0
    %272 = vmatprep.subr.bf16.mxu0 0
    %273 = vmatpush1.bf16.msra.mxu0 0
    %274 = vmatprep.subr.bf16.mxu0 0
    %275 = vmatpush1.bf16.msra.mxu0 0
    %276 = vmatprep.subr.bf16.mxu0 0
    %277 = vmatpush1.bf16.msra.mxu0 0
    %278 = vmatprep.mubr.bf16.mxu0 0
    %279 = vmatmul.mubr.bf16.gmra.mrb[0].mxu0 %v244
    %v280 = vpop.f32.mrb[0].mxu0
    %v281 = vadd.f32 %v241, %v280
    %v282 = vpop.f32.mrb[0].mxu0
    %v283 = vpop.f32.mrb[0].mxu0
    %v284 = vpop.f32.mrb[0].mxu0
    %285 = vdwg.mxu0
    %286 = vst [vmem:[#allocation2] sm:$0x1] %v281
    // Predicated region
    $region30: #{tpu_custom_call.1} parent=1 // pred_check
      _
    $region31: #{tpu_custom_call.1} parent=1 // pred_check_branch
      %288 = sbr.rel (0) target = $region33
    $region32: #{tpu_custom_call.1} parent=1 // pred_region
      %s290 = ssub.s32 16, 16
      %291 = vsyncadd [#allocation3], %s290
      %s293 = sshll.u32 [#allocation2], 4
      %s294 = int_to_ptr.vmem [resolvable:$true] %s293
      %296 = dma.vmem_to_hbm [thread:$0]  %s294, 16, %s7, [#allocation3]
    $region33: #{tpu_custom_call.1} parent=1 // pred_fallthru
      _
    // Predicated region
    $region34: #{tpu_custom_call.1} parent=1 // pred_check
      _
    $region35: #{tpu_custom_call.1} parent=1 // pred_check_branch
      %298 = sbr.rel (0) target = $region37
    $region36: #{tpu_custom_call.1} parent=1 // pred_region
      %299 = dma.done [#allocation3], 16
    $region37: #{tpu_custom_call.1} parent=1 // pred_fallthru
      _
    %300 = vsyncpa [#allocation3], 1

</llo_original>
